<compile_context>
chip_gen: v5e
topology: v5e:2x2
jax: 0.10.0
libtpu: 0.0.40
codegen_flags: <defaults>
</compile_context>

<pallas_src>
import jax
import jax.numpy as jnp
import numpy as np
from jax import lax
from jax.experimental import pallas as pl
from jax.experimental.pallas import tpu as pltpu


def _rope_kernel(x_ref, cos_ref, sin_ref, o_ref):
    # x_ref / o_ref : (TS, D) or (B, TS, D), interleaved layout
    # cos_ref       : (TS, D)  cos_j repeated at lanes 2j and 2j+1
    # sin_ref       : (TS, D)  signed sin: -sin_j at lane 2j, +sin_j at lane 2j+1
    x = x_ref[...]
    cos = cos_ref[...]
    sin = sin_ref[...]

    D = x.shape[-1]
    last = x.ndim - 1
    # roll semantics: roll(x, s)[i] = x[(i - s) % D]
    x_next = pltpu.roll(x, shift=D - 1, axis=last)   # lane i -> x[i + 1]
    x_prev = pltpu.roll(x, shift=1, axis=last)       # lane i -> x[i - 1]

    # Even lanes need the *next* element, odd lanes the *previous* one; the
    # roll wrap-around entries are never selected.
    lane = lax.broadcasted_iota(jnp.int32, (x.shape[-2], D), 1)
    x_swapped = jnp.where((lane & 1) == 0, x_next, x_prev)

    # out[2j]   = x[2j]  *cos_j - x[2j+1]*sin_j
    # out[2j+1] = x[2j+1]*cos_j + x[2j]  *sin_j
    o_ref[...] = (x * cos + x_swapped * sin).astype(o_ref.dtype)


def _build_tables(S, dim, dtype):
    """(S, D) cos/sin tables laid out for the interleaved kernel, in x.dtype."""
    inv_freq = 1.0 / (10000.0 ** (jnp.arange(0, dim, 2, dtype=jnp.float32) / dim))  # (H,)
    pos = jnp.arange(S, dtype=jnp.float32)
    ang = pos[:, None] * inv_freq[None, :]                        # (S, H)
    sin = jnp.sin(ang)
    cos = jnp.cos(ang)
    cos_rep = jnp.repeat(cos, 2, axis=-1)                         # cos_j at 2j, 2j+1
    sin_signed = jnp.stack([-sin, sin], axis=-1).reshape(S, dim)  # -sin at 2j, +sin at 2j+1
    return cos_rep.astype(dtype), sin_signed.astype(dtype)


_PER_SET_BUDGET = 4 * 1024 * 1024  # bytes for one (x + out + 2 tables) block set


def _pick_tiling(B, S, D, itemsize):
    """Sequence tile (multiple of 8) + whether to fold batch into the block."""
    row_xo = 2 * D * itemsize     # x + out bytes per (batch, row)
    row_tbl = 2 * D * itemsize    # cos + sin bytes per row
    fold_batch = (8 * (B * row_xo + row_tbl)) <= _PER_SET_BUDGET
    row_bytes = (B if fold_batch else 1) * row_xo + row_tbl

    if S <= 8:
        return S, fold_batch      # single full-extent sequence block

    max_rows = max(8, (_PER_SET_BUDGET // row_bytes) // 8 * 8)
    ts = min(max(8, (S // 8) * 8), max_rows)
    if S % ts != 0:
        # Prefer an exact divisor near the cap; otherwise rely on cdiv + padded tail.
        for cand in range(ts, max(7, ts // 2 - 1), -8):
            if S % cand == 0:
                ts = cand
                break
    return ts, fold_batch


def rotary_position_embedding(x, dim, max_position=2048):
    """Pallas implementation of RotaryPositionEmbedding.forward (x: (B, S, dim))."""
    if dim % 2 != 0:
        raise ValueError("Dimension must be even for RoPE.")
    B, S, D = x.shape
    assert D == dim
    # max_position is accepted for API parity; like the PyTorch forward, tables
    # depend only on the actual sequence length S.
    del max_position

    itemsize = jnp.dtype(x.dtype).itemsize
    cos_rep, sin_signed = _build_tables(S, dim, x.dtype)

    ts, fold_batch = _pick_tiling(B, S, D, itemsize)
    n_s = pl.cdiv(S, ts)

    if fold_batch:
        grid = (n_s,)
        x_spec = pl.BlockSpec((B, ts, D), lambda s: (0, s, 0))
        tbl_spec = pl.BlockSpec((ts, D), lambda s: (s, 0))
        out_spec = pl.BlockSpec((B, ts, D), lambda s: (0, s, 0))
        semantics = ("parallel",)
        block_rows = B * ts
    else:
        grid = (n_s, B)  # batch innermost -> table DMA reused across batch
        x_spec = pl.BlockSpec((pl.Squeezed(), ts, D), lambda s, b: (b, s, 0))
        tbl_spec = pl.BlockSpec((ts, D), lambda s, b: (s, 0))
        out_spec = pl.BlockSpec((pl.Squeezed(), ts, D), lambda s, b: (b, s, 0))
        semantics = ("parallel", "parallel")
        block_rows = ts

    # VMEM: double-buffered (x + out + 2 tables) blocks, plus headroom.
    # Generation-aware cap so we never request v7x's entire 64 MiB.
    footprint = (2 * block_rows + 2 * ts) * D * itemsize
    try:
        vmem_cap = pltpu.get_tpu_info().vmem_capacity_bytes
    except Exception:  # pragma: no cover - info query unavailable
        vmem_cap = 64 * 1024 * 1024
    vmem_limit = int(min(48 * 1024 * 1024,
                         (vmem_cap * 3) // 4,
                         max(16 * 1024 * 1024, 2 * footprint + 4 * 1024 * 1024)))

    cost = pl.CostEstimate(
        flops=4 * B * S * D,
        transcendentals=0,
        bytes_accessed=2 * B * S * D * itemsize + 2 * S * D * itemsize,
    )

    out = pl.pallas_call(
        _rope_kernel,
        out_shape=jax.ShapeDtypeStruct((B, S, D), x.dtype),
        grid_spec=pltpu.PrefetchScalarGridSpec(
            num_scalar_prefetch=0,
            grid=grid,
            in_specs=[x_spec, tbl_spec, tbl_spec],
            out_specs=out_spec,
        ),
        compiler_params=pltpu.CompilerParams(
            dimension_semantics=semantics,
            vmem_limit_bytes=vmem_limit,
        ),
        cost_estimate=cost,
    )(x, cos_rep, sin_signed)
    return out


def _rope_reference(x, dim):
    """Pure JAX f32 reference mirroring the PyTorch forward, for validation."""
    B, S, D = x.shape
    x = x.astype(jnp.float32)
    inv_freq = 1.0 / (10000.0 ** (jnp.arange(0, dim, 2, dtype=jnp.float32) / dim))
    position = jnp.arange(S, dtype=jnp.float32)
    sinusoid = jnp.einsum("i,j->ij", position, inv_freq)
    sin = jnp.sin(sinusoid)[None]
    cos = jnp.cos(sinusoid)[None]
    x1, x2 = x[..., 0::2], x[..., 1::2]
    return jnp.stack([x1 * cos - x2 * sin, x1 * sin + x2 * cos], axis=-1).reshape(B, S, D)


if __name__ == "__main__":
    key = jax.random.PRNGKey(0)

    # f32 test (tight tolerance)
    B, S, D = 2, 8, 128
    x = jax.random.normal(key, (B, S, D), dtype=jnp.float32)
    out = jax.block_until_ready(rotary_position_embedding(x, dim=D))
    ref = _rope_reference(x, dim=D)
    np.testing.assert_allclose(np.asarray(out), np.asarray(ref), rtol=1e-5, atol=1e-5)

    # bf16 test (bf16 tables + bf16 MACs -> looser tolerance)
    key_b = jax.random.PRNGKey(1)
    Bb, Sb, Db = 2, 16, 128
    xb = jax.random.normal(key_b, (Bb, Sb, Db), dtype=jnp.bfloat16)
    outb = jax.block_until_ready(rotary_position_embedding(xb, dim=Db))
    refb = _rope_reference(xb, dim=Db)
    np.testing.assert_allclose(np.asarray(outb, dtype=np.float32),
                               np.asarray(refb), rtol=5e-2, atol=5e-2)

    print("KERNEL_OK")
</pallas_src>

<mosaic_0001>
module attributes {stable_mosaic.version = 11 : i64} {
  func.func @_rope_kernel(%arg0: i32, %arg1: memref<2x8x128xf32, #tpu.memory_space<vmem>>, %arg2: memref<8x128xf32, #tpu.memory_space<vmem>>, %arg3: memref<8x128xf32, #tpu.memory_space<vmem>>, %arg4: memref<2x8x128xf32, #tpu.memory_space<vmem>>) attributes {dimension_semantics = [#tpu.dimension_semantics<parallel>], iteration_bounds = array<i64: 1>, scalar_prefetch = 0 : i64, scratch_operands = 0 : i64, tpu.core_type = #tpu.core_type<tc>, window_params = [{transform_indices = @transform_0, window_bounds = array<i64: 2, 8, 128>}, {transform_indices = @transform_1, window_bounds = array<i64: 8, 128>}, {transform_indices = @transform_2, window_bounds = array<i64: 8, 128>}, {transform_indices = @transform_3, window_bounds = array<i64: 2, 8, 128>}]} {
    %c0 = arith.constant 0 : index
    %c0_0 = arith.constant 0 : index
    %c0_1 = arith.constant 0 : index
    %0 = vector.load %arg1[%c0, %c0_0, %c0_1] : memref<2x8x128xf32, #tpu.memory_space<vmem>>, vector<2x8x128xf32>
    %c0_2 = arith.constant 0 : index
    %c0_3 = arith.constant 0 : index
    %1 = vector.load %arg2[%c0_2, %c0_3] : memref<8x128xf32, #tpu.memory_space<vmem>>, vector<8x128xf32>
    %c0_4 = arith.constant 0 : index
    %c0_5 = arith.constant 0 : index
    %2 = vector.load %arg3[%c0_4, %c0_5] : memref<8x128xf32, #tpu.memory_space<vmem>>, vector<8x128xf32>
    %c127_i32 = arith.constant 127 : i32
    %3 = tpu.dynamic_rotate %0 by %c127_i32 dim 2 : vector<2x8x128xf32>, i32 -> vector<2x8x128xf32>
    %c1_i32 = arith.constant 1 : i32
    %4 = tpu.dynamic_rotate %0 by %c1_i32 dim 2 : vector<2x8x128xf32>, i32 -> vector<2x8x128xf32>
    %5 = tpu.iota {dimensions = array<i32: 1>} : vector<8x128xi32>
    %c1_i32_6 = arith.constant 1 : i32
    %6 = vector.broadcast %c1_i32_6 : i32 to vector<8x128xi32>
    %7 = arith.andi %5, %6 : vector<8x128xi32>
    %c0_i32 = arith.constant 0 : i32
    %8 = vector.broadcast %c0_i32 : i32 to vector<8x128xi32>
    %9 = arith.cmpi eq, %7, %8 : vector<8x128xi32>
    %10 = vector.shape_cast %9 : vector<8x128xi1> to vector<1x8x128xi1>
    %11 = vector.broadcast %10 : vector<1x8x128xi1> to vector<2x8x128xi1>
    %12 = arith.select %11, %3, %4 : vector<2x8x128xi1>, vector<2x8x128xf32>
    %13 = vector.shape_cast %1 : vector<8x128xf32> to vector<1x8x128xf32>
    %14 = vector.broadcast %13 : vector<1x8x128xf32> to vector<2x8x128xf32>
    %15 = arith.mulf %0, %14 : vector<2x8x128xf32>
    %16 = vector.shape_cast %2 : vector<8x128xf32> to vector<1x8x128xf32>
    %17 = vector.broadcast %16 : vector<1x8x128xf32> to vector<2x8x128xf32>
    %18 = arith.mulf %12, %17 : vector<2x8x128xf32>
    %19 = arith.addf %15, %18 : vector<2x8x128xf32>
    %c0_7 = arith.constant 0 : index
    %c0_8 = arith.constant 0 : index
    %c0_9 = arith.constant 0 : index
    %20 = vector.load %arg4[%c0_7, %c0_8, %c0_9] : memref<2x8x128xf32, #tpu.memory_space<vmem>>, vector<2x8x128xf32>
    tpu.vector_store %arg4[%c0_7, %c0_8, %c0_9], %19 {strides = array<i32>} : memref<2x8x128xf32, #tpu.memory_space<vmem>>, vector<2x8x128xf32>,
    return
  }
  func.func @transform_0(%arg0: i32) -> (i32, i32, i32) {
    %c0_i32 = arith.constant 0 : i32
    %c0_i32_0 = arith.constant 0 : i32
    %c0_i32_1 = arith.constant 0 : i32
    return %c0_i32, %arg0, %c0_i32_0 : i32, i32, i32
  }
  func.func @transform_1(%arg0: i32) -> (i32, i32) {
    %c0_i32 = arith.constant 0 : i32
    %c0_i32_0 = arith.constant 0 : i32
    return %arg0, %c0_i32 : i32, i32
  }
  func.func @transform_2(%arg0: i32) -> (i32, i32) {
    %c0_i32 = arith.constant 0 : i32
    %c0_i32_0 = arith.constant 0 : i32
    return %arg0, %c0_i32 : i32, i32
  }
  func.func @transform_3(%arg0: i32) -> (i32, i32, i32) {
    %c0_i32 = arith.constant 0 : i32
    %c0_i32_0 = arith.constant 0 : i32
    %c0_i32_1 = arith.constant 0 : i32
    return %c0_i32, %arg0, %c0_i32_0 : i32, i32, i32
  }
}

</mosaic_0001>

<llo_original>
// kernel: tpu_custom_call.1
$region0: #{tpu_custom_call.1}
  #allocation0 [shape = 'u32[]', space=smem, size = 0x4, offset = 0x4, fixed_abs, tag = 'smem constant byte address 0x4 - core index']
  #allocation1 [shape = 'u32[72,128]{1,0:T(1,128)}', space=vmem, size = 0x9000, scoped, tag = 'internal scratch']
  %s0 = inlined_call_operand.hbm [shape: f32[2,8,128], index: 0, kind: input, shape index: {}]
  %s1 = inlined_call_operand.hbm [shape: f32[8,128], index: 1, kind: input, shape index: {}]
  %s2 = inlined_call_operand.hbm [shape: f32[8,128], index: 2, kind: input, shape index: {}]
  %s3 = inlined_call_operand.hbm [shape: f32[2,8,128], index: 3, kind: output, shape index: {}]
  %s4 = sld [smem:[#allocation0]]
  $region34: #{tpu_custom_call.1} parent=0
    _
  %s6 = ssub.s32 1, %s4
  %s7 = scalar_select 0, %s6, %s4
  $region1: #{tpu_custom_call.1} parent=0
    #allocation2 [shape = 'u8[8192]{0}', space=vmem, size = 0x2000, scoped, tag = 'input window, operand 0, single buffered']
    #allocation3 [shape = 's32[1]{0}', space=sflag, size = 0x4, scoped, tag = 'scoped memory for tpu_custom_call.1']
    #allocation4 [shape = 's32[1]{0}', space=sflag, size = 0x4, scoped, tag = 'scoped memory for tpu_custom_call.1']
    #allocation5 [shape = 'u8[4096]{0}', space=vmem, size = 0x1000, scoped, tag = 'input window, operand 1, single buffered']
    #allocation6 [shape = 's32[1]{0}', space=sflag, size = 0x4, scoped, tag = 'scoped memory for tpu_custom_call.1']
    #allocation7 [shape = 'u8[4096]{0}', space=vmem, size = 0x1000, scoped, tag = 'input window, operand 2, single buffered']
    #allocation8 [shape = 'u8[8192]{0}', space=vmem, size = 0x2000, scoped, tag = 'output window, operand 0, single buffered']
    %8 = vsyncpa [#allocation3], 0
    %9 = vsyncpa [#allocation6], 0
    %10 = vsyncpa [#allocation4], 0
    // Predicated region
    $region2: #{tpu_custom_call.1} parent=1 // pred_check
      _
    $region3: #{tpu_custom_call.1} parent=1 // pred_check_branch
      %12 = sbr.rel (0) target = $region5
    $region4: #{tpu_custom_call.1} parent=1 // pred_region
      %14 = vsyncadd [#allocation3], 0
      %s15 = sshll.u32 %s0, 4
      %s16 = int_to_ptr.hbm [resolvable:$true] %s15
      %s17 = sshll.u32 [#allocation2], 4
      %s18 = int_to_ptr.vmem [resolvable:$true] %s17
      %23 = dma.hbm_to_vmem [thread:$0]  %s16, 256, %s18, [#allocation3], 128, 128, 8
    $region5: #{tpu_custom_call.1} parent=1 // pred_fallthru
      _
    // Predicated region
    $region6: #{tpu_custom_call.1} parent=1 // pred_check
      _
    $region7: #{tpu_custom_call.1} parent=1 // pred_check_branch
      %25 = sbr.rel (0) target = $region9
    $region8: #{tpu_custom_call.1} parent=1 // pred_region
      %27 = vsyncadd [#allocation6], 0
      %s29 = sshll.u32 %s1, 4
      %s30 = int_to_ptr.hbm [resolvable:$true] %s29
      %s31 = sshll.u32 [#allocation5], 4
      %s32 = int_to_ptr.vmem [resolvable:$true] %s31
      %34 = dma.hbm_to_vmem [thread:$0]  %s30, 128, %s32, [#allocation6]
    $region9: #{tpu_custom_call.1} parent=1 // pred_fallthru
      _
    // Predicated region
    $region10: #{tpu_custom_call.1} parent=1 // pred_check
      _
    $region11: #{tpu_custom_call.1} parent=1 // pred_check_branch
      %36 = sbr.rel (0) target = $region13
    $region12: #{tpu_custom_call.1} parent=1 // pred_region
      %38 = vsyncadd [#allocation6], 0
      %s40 = sshll.u32 %s2, 4
      %s41 = int_to_ptr.hbm [resolvable:$true] %s40
      %s42 = sshll.u32 [#allocation7], 4
      %s43 = int_to_ptr.vmem [resolvable:$true] %s42
      %45 = dma.hbm_to_vmem [thread:$0]  %s41, 128, %s43, [#allocation6]
    $region13: #{tpu_custom_call.1} parent=1 // pred_fallthru
      _
    // Predicated region
    $region14: #{tpu_custom_call.1} parent=1 // pred_check
      _
    $region15: #{tpu_custom_call.1} parent=1 // pred_check_branch
      %47 = sbr.rel (0) target = $region17
    $region16: #{tpu_custom_call.1} parent=1 // pred_region
      %49 = dma.done [#allocation3], 256
    $region17: #{tpu_custom_call.1} parent=1 // pred_fallthru
      _
    // Predicated region
    $region18: #{tpu_custom_call.1} parent=1 // pred_check
      _
    $region19: #{tpu_custom_call.1} parent=1 // pred_check_branch
      %51 = sbr.rel (0) target = $region21
    $region20: #{tpu_custom_call.1} parent=1 // pred_region
      %53 = dma.done [#allocation6], 128
    $region21: #{tpu_custom_call.1} parent=1 // pred_fallthru
      _
    // Predicated region
    $region22: #{tpu_custom_call.1} parent=1 // pred_check
      _
    $region23: #{tpu_custom_call.1} parent=1 // pred_check_branch
      %55 = sbr.rel (0) target = $region25
    $region24: #{tpu_custom_call.1} parent=1 // pred_region
      %57 = dma.done [#allocation6], 128
    $region25: #{tpu_custom_call.1} parent=1 // pred_fallthru
      _
    %v58 = vld [vmem:[#allocation2] sm:$0xff]
    %v59 = vld [vmem:[#allocation2 + $0x8] sm:$0xff]
    %v60 = vld [vmem:[#allocation5] sm:$0xff]
    %v61 = vld [vmem:[#allocation7] sm:$0xff]
    %62 = vrot.lane.b32.xlu0 %v58, 127
    %v63 = vpop.permute.xlu0 %62
    %64 = vrot.lane.b32.xlu0 %v59, 127
    %v65 = vpop.permute.xlu0 %64
    %66 = vrot.lane.b32.xlu0 %v58, 1
    %v67 = vpop.permute.xlu0 %66
    %68 = vrot.lane.b32.xlu0 %v59, 1
    %v69 = vpop.permute.xlu0 %68
    %v70 = vlaneseq
    %v71 = vand.u32 %v70, 127
    %v72 = vand.u32 %v71, 1
    %vm73 = vcmp.eq.s32.totalorder %v72, 0
    %v74 = vsel %vm73, 1, 0
    %vm75 = vcmp.eq.s32.totalorder %v74, 1
    %v76 = vsel %vm75, %v63, %v67
    %v77 = vsel %vm75, %v65, %v69
    %v78 = vmul.f32 %v58, %v60
    %v79 = vmul.f32 %v59, %v60
    %v80 = vmul.f32 %v76, %v61
    %v81 = vmul.f32 %v77, %v61
    %v82 = vadd.f32 %v78, %v80
    %v83 = vadd.f32 %v79, %v81
    %84 = vst [vmem:[#allocation8] sm:$0xff] %v82
    %85 = vst [vmem:[#allocation8 + $0x8] sm:$0xff] %v83
    // Predicated region
    $region26: #{tpu_custom_call.1} parent=1 // pred_check
      _
    $region27: #{tpu_custom_call.1} parent=1 // pred_check_branch
      %87 = sbr.rel (0) target = $region29
    $region28: #{tpu_custom_call.1} parent=1 // pred_region
      %89 = vsyncadd [#allocation4], 0
      %s90 = sshll.u32 [#allocation8], 4
      %s91 = int_to_ptr.vmem [resolvable:$true] %s90
      %s92 = sshll.u32 %s3, 4
      %s93 = int_to_ptr.hbm [resolvable:$true] %s92
      %98 = dma.vmem_to_hbm [thread:$0]  %s91, 256, %s93, [#allocation4], 128, 128, 8
    $region29: #{tpu_custom_call.1} parent=1 // pred_fallthru
      _
    // Predicated region
    $region30: #{tpu_custom_call.1} parent=1 // pred_check
      _
    $region31: #{tpu_custom_call.1} parent=1 // pred_check_branch
      %100 = sbr.rel (0) target = $region33
    $region32: #{tpu_custom_call.1} parent=1 // pred_region
      %102 = dma.done [#allocation4], 256
    $region33: #{tpu_custom_call.1} parent=1 // pred_fallthru
      _
    %103 = vsyncpa [#allocation3], 1
    %104 = vsyncpa [#allocation6], 1
    %105 = vsyncpa [#allocation4], 1

</llo_original>
